<compile_context>
chip_gen: v6e
topology: v6e:2x2x1
jax: 0.10.0
libtpu: 0.0.40
codegen_flags: <defaults>
</compile_context>

<pallas_src>
import functools

import jax
import jax.numpy as jnp
from jax.experimental import pallas as pl
from jax.experimental.pallas import tpu as pltpu


# ----------------------------------------------------------------------------
# Pallas kernel: one grid step computes TILE output pixels for all N*C maps.
# ----------------------------------------------------------------------------
def _warp_kernel(t_ref, gx_ref, gy_ref, img_ref, o_ref, *, H, W, NC):
    # t_ref  : (6,)       f32 SMEM  — affine dst-normalized -> src-normalized
    # gx_ref : (1, TILE)  f32 VMEM  — normalized output x coords of this tile
    # gy_ref : (1, TILE)  f32 VMEM  — normalized output y coords of this tile
    # img_ref: (NC*H, W)  bf16 VMEM — full image, rows ordered (n, c, h)
    # o_ref  : (NC, TILE) f32 VMEM  — output pixels of this tile
    tile = o_ref.shape[1]

    gx = gx_ref[...]
    gy = gy_ref[...]
    t00, t01, t02 = t_ref[0], t_ref[1], t_ref[2]
    t10, t11, t12 = t_ref[3], t_ref[4], t_ref[5]

    # Rigid body => pure affine map, no projective divide needed.
    sx = t00 * gx + t01 * gy + t02          # (1, TILE) src x, normalized
    sy = t10 * gx + t11 * gy + t12          # (1, TILE) src y, normalized

    # grid_sample(align_corners=False): pix = ((coord + 1) * size - 1) / 2.
    ix = (sx + 1.0) * (0.5 * W) - 0.5       # (1, TILE) src x, pixels
    iy = (sy + 1.0) * (0.5 * H) - 0.5       # (1, TILE) src y, pixels

    # Separable bilinear "hat" weights.  For integer source col c / row r,
    #   wx[c, p] = max(0, 1 - |c - ix_p|),  wy[r, p] = max(0, 1 - |r - iy_p|)
    # are exactly the grid_sample bilinear weights with zeros padding
    # (out-of-range taps get weight 0; rows/cols outside the image simply do
    # not exist in the weight matrices).  Built at (W,TILE)/(H,TILE) scale.
    cols = jax.lax.broadcasted_iota(jnp.int32, (W, tile), 0).astype(jnp.float32)
    rows = jax.lax.broadcasted_iota(jnp.int32, (H, tile), 0).astype(jnp.float32)
    wx = jnp.maximum(1.0 - jnp.abs(cols - ix), 0.0)       # (W, TILE)
    wy = jnp.maximum(1.0 - jnp.abs(rows - iy), 0.0)       # (H, TILE)

    # Stage 1: x-interpolation on the MXU (bf16 in, f32 accumulate).
    a = jnp.dot(img_ref[...], wx.astype(jnp.bfloat16),
                preferred_element_type=jnp.float32)       # (NC*H, TILE)

    # Stage 2: y-interpolation as an f32 weighted reduction over H.
    a3 = a.reshape(NC, H, tile)
    o_ref[...] = jnp.sum(a3 * wy[None, :, :], axis=1).astype(o_ref.dtype)


# ----------------------------------------------------------------------------
# Glue: 3x3 matrix setup (same math as the PyTorch module / torchgeometry).
# ----------------------------------------------------------------------------
def _inv3x3(m):
    a, b, c = m[0, 0], m[0, 1], m[0, 2]
    d, e, f = m[1, 0], m[1, 1], m[1, 2]
    g, h, i = m[2, 0], m[2, 1], m[2, 2]
    det = a * (e * i - f * h) - b * (d * i - f * g) + c * (d * h - e * g)
    adj = jnp.stack([
        jnp.stack([e * i - f * h, c * h - b * i, b * f - c * e]),
        jnp.stack([f * g - d * i, a * i - c * g, c * d - a * f]),
        jnp.stack([d * h - e * g, b * g - a * h, a * e - b * d]),
    ])
    return adj / det


def _rigid_body_transform(a, xt, yt, anchor_x, anchor_y):
    a = -1.0 * a
    ca, sa = jnp.cos(a), jnp.sin(a)
    row0 = jnp.stack([ca, -sa, anchor_x - anchor_x * ca + anchor_y * sa + xt])
    row1 = jnp.stack([sa, ca, anchor_y - anchor_x * sa - anchor_y * ca + yt])
    row2 = jnp.array([0.0, 0.0, 1.0], dtype=jnp.float32)
    return jnp.stack([row0, row1, row2])


def _normal_transform_pixel(h, w):
    return jnp.array([[2.0 / (w - 1.0), 0.0, -1.0],
                      [0.0, 2.0 / (h - 1.0), -1.0],
                      [0.0, 0.0, 1.0]], dtype=jnp.float32)


def rigid_body_transformation_forward(x, angle, x_pos, y_pos):
    """x: [N, C, H, W] float32 (NCHW, like PyTorch). Returns [N, C, H, W]."""
    N, C, H, W = x.shape
    anchor_x, anchor_y = W / 2.0, H / 2.0

    # M: src-pixel -> dst-pixel transform (exactly the PyTorch module's math).
    M = _rigid_body_transform(angle[0], x_pos[0] * (W / 2.0),
                              y_pos[0] * (H / 2.0), anchor_x, anchor_y)
    # torchgeometry.warp_perspective chain (dsize == src size):
    #   T = inv( Nn @ M @ inv(Nn) )  maps dst-normalized -> src-normalized.
    Nn = _normal_transform_pixel(H, W)
    T = _inv3x3(Nn @ M @ _inv3x3(Nn))
    # Rigid body => T is affine (last row exactly [0, 0, T22]); normalize and
    # keep only the 6 affine coefficients (drops the projective divide).
    T = T / T[2, 2]
    t6 = T[:2, :].reshape(6).astype(jnp.float32)

    NC = N * C
    P = H * W
    # Lane-dense tiling of the flattened output pixels.  TILE=256 fills the
    # 256-wide MXU result dim (v6e/v7x) when there is enough work, else 128;
    # always a multiple of 128 -> unmasked full-lane output stores.
    TILE = 256 if (P % 256 == 0 and P // 256 >= 2) else 128
    ntiles = pl.cdiv(P, TILE)
    P_pad = ntiles * TILE

    # Normalized output meshgrid (torchgeometry create_meshgrid), flattened
    # row-major and zero-padded up to the lane-dense width (padded columns are
    # computed with finite garbage and sliced off below).
    xs = 2.0 * jnp.arange(W, dtype=jnp.float32) / (W - 1.0) - 1.0
    ys = 2.0 * jnp.arange(H, dtype=jnp.float32) / (H - 1.0) - 1.0
    gx = jnp.tile(xs, H)
    gy = jnp.repeat(ys, W)
    if P_pad != P:
        pad = P_pad - P
        gx = jnp.concatenate([gx, jnp.zeros((pad,), jnp.float32)])
        gy = jnp.concatenate([gy, jnp.zeros((pad,), jnp.float32)])
    gx = gx.reshape(1, P_pad)
    gy = gy.reshape(1, P_pad)

    # bf16 image: native MXU input dtype; halves resident VMEM / HBM traffic.
    img = x.reshape(NC * H, W).astype(jnp.bfloat16)

    out_flat = pl.pallas_call(
        functools.partial(_warp_kernel, H=H, W=W, NC=NC),
        out_shape=jax.ShapeDtypeStruct((NC, P_pad), jnp.float32),
        grid_spec=pltpu.PrefetchScalarGridSpec(
            num_scalar_prefetch=0,
            grid=(ntiles,),
            in_specs=[
                pl.BlockSpec(memory_space=pltpu.MemorySpace.SMEM),   # t6 (6,)
                pl.BlockSpec((1, TILE), lambda i: (0, i)),           # gx tile
                pl.BlockSpec((1, TILE), lambda i: (0, i)),           # gy tile
                pl.BlockSpec((NC * H, W), lambda i: (0, 0)),         # image
            ],
            out_specs=pl.BlockSpec((NC, TILE), lambda i: (0, i)),
        ),
        compiler_params=pltpu.CompilerParams(
            dimension_semantics=("parallel",),
            vmem_limit_bytes=32 * 1024 * 1024),
    )(t6, gx, gy, img)

    return out_flat[:, :P].reshape(N, C, H, W).astype(x.dtype)


# ----------------------------------------------------------------------------
# Pure-JAX reference (full projective form + explicit 4-corner gather),
# independent of the kernel's affine/separable path.
# ----------------------------------------------------------------------------
def _reference_forward(x, angle, x_pos, y_pos):
    N, C, H, W = x.shape
    anchor_x, anchor_y = W / 2.0, H / 2.0
    M = _rigid_body_transform(angle[0], x_pos[0] * (W / 2.0),
                              y_pos[0] * (H / 2.0), anchor_x, anchor_y)
    Nn = _normal_transform_pixel(H, W)
    T = _inv3x3(Nn @ M @ _inv3x3(Nn))

    gx, gy = jnp.meshgrid(jnp.linspace(-1.0, 1.0, W),
                          jnp.linspace(-1.0, 1.0, H))
    u = T[0, 0] * gx + T[0, 1] * gy + T[0, 2]
    v = T[1, 0] * gx + T[1, 1] * gy + T[1, 2]
    w = T[2, 0] * gx + T[2, 1] * gy + T[2, 2]
    sx, sy = u / w, v / w
    ix = ((sx + 1.0) * W - 1.0) * 0.5
    iy = ((sy + 1.0) * H - 1.0) * 0.5
    x0 = jnp.floor(ix).astype(jnp.int32)
    y0 = jnp.floor(iy).astype(jnp.int32)
    x1, y1 = x0 + 1, y0 + 1
    wx1, wy1 = ix - x0, iy - y0
    wx0, wy0 = 1.0 - wx1, 1.0 - wy1

    def corner(cy, cx, wgt):
        valid = (cx >= 0) & (cx < W) & (cy >= 0) & (cy < H)
        cyc = jnp.clip(cy, 0, H - 1)
        cxc = jnp.clip(cx, 0, W - 1)
        vals = x[:, :, cyc, cxc]
        return vals * (wgt * valid)[None, None]

    return (corner(y0, x0, wy0 * wx0) + corner(y0, x1, wy0 * wx1)
            + corner(y1, x0, wy1 * wx0) + corner(y1, x1, wy1 * wx1))


if __name__ == "__main__":
    key = jax.random.PRNGKey(0)
    x = jax.random.normal(key, (2, 4, 16, 16), dtype=jnp.float32)

    # Deterministic "parameters" (nn.Parameter(torch.ones(1) * v) in __init__).
    a, xt, yt = 0.3, 0.1, -0.2
    angle = jnp.ones((1,), jnp.float32) * a
    x_pos = jnp.ones((1,), jnp.float32) * xt
    y_pos = jnp.ones((1,), jnp.float32) * yt

    out = rigid_body_transformation_forward(x, angle, x_pos, y_pos)
    out = jax.block_until_ready(out)

    ref = _reference_forward(x, angle, x_pos, y_pos)
    assert out.shape == ref.shape == x.shape
    # Tolerance budget: the image and the x-interpolation weights enter the MXU
    # in bf16 (~2^-9 relative each), bounding the output error at ~1.5e-2 abs
    # for N(0,1) data; the y-weights and all accumulation stay in f32.  An
    # all-f32 variant of this kernel matches the reference to ~1e-6.
    max_err = float(jnp.max(jnp.abs(out - ref)))
    assert jnp.allclose(out, ref, atol=3e-2, rtol=3e-2), max_err

    print("KERNEL_OK")
</pallas_src>

<mosaic_0001>
module attributes {stable_mosaic.version = 11 : i64} {
  func.func @_warp_kernel(%arg0: i32, %arg1: memref<6xf32, #tpu.memory_space<smem>>, %arg2: memref<1x128xf32, #tpu.memory_space<vmem>>, %arg3: memref<1x128xf32, #tpu.memory_space<vmem>>, %arg4: memref<128x16xbf16, #tpu.memory_space<vmem>>, %arg5: memref<8x128xf32, #tpu.memory_space<vmem>>) attributes {dimension_semantics = [#tpu.dimension_semantics<parallel>], iteration_bounds = array<i64: 2>, scalar_prefetch = 0 : i64, scratch_operands = 0 : i64, tpu.core_type = #tpu.core_type<tc>, window_params = [{transform_indices = @transform_0, window_bounds = array<i64: 6>}, {transform_indices = @transform_1, window_bounds = array<i64: 1, 128>}, {transform_indices = @transform_2, window_bounds = array<i64: 1, 128>}, {pipeline_mode = #tpu.pipeline_mode<synchronous>, transform_indices = @transform_3, window_bounds = array<i64: 128, 16>}, {transform_indices = @transform_4, window_bounds = array<i64: 8, 128>}]} {
    %c0 = arith.constant 0 : index
    %c0_0 = arith.constant 0 : index
    %0 = vector.load %arg2[%c0, %c0_0] : memref<1x128xf32, #tpu.memory_space<vmem>>, vector<1x128xf32>
    %c0_1 = arith.constant 0 : index
    %c0_2 = arith.constant 0 : index
    %1 = vector.load %arg3[%c0_1, %c0_2] : memref<1x128xf32, #tpu.memory_space<vmem>>, vector<1x128xf32>
    %c0_3 = arith.constant 0 : index
    %2 = memref.load %arg1[%c0_3] : memref<6xf32, #tpu.memory_space<smem>>
    %c1 = arith.constant 1 : index
    %3 = memref.load %arg1[%c1] : memref<6xf32, #tpu.memory_space<smem>>
    %c2 = arith.constant 2 : index
    %4 = memref.load %arg1[%c2] : memref<6xf32, #tpu.memory_space<smem>>
    %c3 = arith.constant 3 : index
    %5 = memref.load %arg1[%c3] : memref<6xf32, #tpu.memory_space<smem>>
    %c4 = arith.constant 4 : index
    %6 = memref.load %arg1[%c4] : memref<6xf32, #tpu.memory_space<smem>>
    %c5 = arith.constant 5 : index
    %7 = memref.load %arg1[%c5] : memref<6xf32, #tpu.memory_space<smem>>
    %8 = vector.broadcast %2 : f32 to vector<1x128xf32>
    %9 = arith.mulf %8, %0 : vector<1x128xf32>
    %10 = vector.broadcast %3 : f32 to vector<1x128xf32>
    %11 = arith.mulf %10, %1 : vector<1x128xf32>
    %12 = arith.addf %9, %11 : vector<1x128xf32>
    %13 = vector.broadcast %4 : f32 to vector<1x128xf32>
    %14 = arith.addf %12, %13 : vector<1x128xf32>
    %15 = vector.broadcast %5 : f32 to vector<1x128xf32>
    %16 = arith.mulf %15, %0 : vector<1x128xf32>
    %17 = vector.broadcast %6 : f32 to vector<1x128xf32>
    %18 = arith.mulf %17, %1 : vector<1x128xf32>
    %19 = arith.addf %16, %18 : vector<1x128xf32>
    %20 = vector.broadcast %7 : f32 to vector<1x128xf32>
    %21 = arith.addf %19, %20 : vector<1x128xf32>
    %cst = arith.constant 1.000000e+00 : f32
    %22 = vector.broadcast %cst : f32 to vector<1x128xf32>
    %23 = arith.addf %14, %22 : vector<1x128xf32>
    %cst_4 = arith.constant 8.000000e+00 : f32
    %24 = vector.broadcast %cst_4 : f32 to vector<1x128xf32>
    %25 = arith.mulf %23, %24 : vector<1x128xf32>
    %cst_5 = arith.constant 5.000000e-01 : f32
    %26 = vector.broadcast %cst_5 : f32 to vector<1x128xf32>
    %27 = arith.subf %25, %26 : vector<1x128xf32>
    %cst_6 = arith.constant 1.000000e+00 : f32
    %28 = vector.broadcast %cst_6 : f32 to vector<1x128xf32>
    %29 = arith.addf %21, %28 : vector<1x128xf32>
    %cst_7 = arith.constant 8.000000e+00 : f32
    %30 = vector.broadcast %cst_7 : f32 to vector<1x128xf32>
    %31 = arith.mulf %29, %30 : vector<1x128xf32>
    %cst_8 = arith.constant 5.000000e-01 : f32
    %32 = vector.broadcast %cst_8 : f32 to vector<1x128xf32>
    %33 = arith.subf %31, %32 : vector<1x128xf32>
    %34 = tpu.iota {dimensions = array<i32: 0>} : vector<16x128xi32>
    %35 = arith.sitofp %34 : vector<16x128xi32> to vector<16x128xf32>
    %36 = tpu.iota {dimensions = array<i32: 0>} : vector<16x128xi32>
    %37 = arith.sitofp %36 : vector<16x128xi32> to vector<16x128xf32>
    %38 = vector.broadcast %27 : vector<1x128xf32> to vector<16x128xf32>
    %39 = arith.subf %35, %38 : vector<16x128xf32>
    %40 = math.absf %39 : vector<16x128xf32>
    %cst_9 = arith.constant 1.000000e+00 : f32
    %41 = vector.broadcast %cst_9 : f32 to vector<16x128xf32>
    %42 = arith.subf %41, %40 : vector<16x128xf32>
    %cst_10 = arith.constant 0.000000e+00 : f32
    %43 = vector.broadcast %cst_10 : f32 to vector<16x128xf32>
    %44 = arith.maximumf %42, %43 : vector<16x128xf32>
    %45 = vector.broadcast %33 : vector<1x128xf32> to vector<16x128xf32>
    %46 = arith.subf %37, %45 : vector<16x128xf32>
    %47 = math.absf %46 : vector<16x128xf32>
    %cst_11 = arith.constant 1.000000e+00 : f32
    %48 = vector.broadcast %cst_11 : f32 to vector<16x128xf32>
    %49 = arith.subf %48, %47 : vector<16x128xf32>
    %cst_12 = arith.constant 0.000000e+00 : f32
    %50 = vector.broadcast %cst_12 : f32 to vector<16x128xf32>
    %51 = arith.maximumf %49, %50 : vector<16x128xf32>
    %c0_13 = arith.constant 0 : index
    %c0_14 = arith.constant 0 : index
    %52 = vector.load %arg4[%c0_13, %c0_14] : memref<128x16xbf16, #tpu.memory_space<vmem>>, vector<128x16xbf16>
    %53 = arith.truncf %44 : vector<16x128xf32> to vector<16x128xbf16>
    %cst_15 = arith.constant dense<0.000000e+00> : vector<128x128xf32>
    %54 = tpu.matmul %52, %53, %cst_15 {dimension_numbers = #tpu.dot_dimension_numbers<[1], [0], [0], [1], [0, 0, 1, 1], [], []>} : vector<128x16xbf16>, vector<16x128xbf16>, vector<128x128xf32> -> vector<128x128xf32>
    %55 = vector.shape_cast %54 : vector<128x128xf32> to vector<8x16x128xf32>
    %56 = vector.shape_cast %51 : vector<16x128xf32> to vector<1x16x128xf32>
    %57 = vector.broadcast %56 : vector<1x16x128xf32> to vector<8x16x128xf32>
    %58 = arith.mulf %55, %57 : vector<8x16x128xf32>
    %cst_16 = arith.constant dense<0.000000e+00> : vector<8x128xf32>
    %59 = vector.multi_reduction <add>, %58, %cst_16 [1] : vector<8x16x128xf32> to vector<8x128xf32>
    %c0_17 = arith.constant 0 : index
    %c0_18 = arith.constant 0 : index
    %60 = vector.load %arg5[%c0_17, %c0_18] : memref<8x128xf32, #tpu.memory_space<vmem>>, vector<8x128xf32>
    tpu.vector_store %arg5[%c0_17, %c0_18], %59 {strides = array<i32>} : memref<8x128xf32, #tpu.memory_space<vmem>>, vector<8x128xf32>,
    return
  }
  func.func @transform_0(%arg0: i32) -> i32 {
    %c0_i32 = arith.constant 0 : i32
    %c0_i32_0 = arith.constant 0 : i32
    return %c0_i32 : i32
  }
  func.func @transform_1(%arg0: i32) -> (i32, i32) {
    %c0_i32 = arith.constant 0 : i32
    %c0_i32_0 = arith.constant 0 : i32
    return %c0_i32, %arg0 : i32, i32
  }
  func.func @transform_2(%arg0: i32) -> (i32, i32) {
    %c0_i32 = arith.constant 0 : i32
    %c0_i32_0 = arith.constant 0 : i32
    return %c0_i32, %arg0 : i32, i32
  }
  func.func @transform_3(%arg0: i32) -> (i32, i32) {
    %c0_i32 = arith.constant 0 : i32
    %c0_i32_0 = arith.constant 0 : i32
    %c0_i32_1 = arith.constant 0 : i32
    return %c0_i32, %c0_i32_0 : i32, i32
  }
  func.func @transform_4(%arg0: i32) -> (i32, i32) {
    %c0_i32 = arith.constant 0 : i32
    %c0_i32_0 = arith.constant 0 : i32
    return %c0_i32, %arg0 : i32, i32
  }
}

</mosaic_0001>

<llo_original>
// kernel: tpu_custom_call.1
$region0: #{tpu_custom_call.1}
  #allocation0 [shape = 'u32[]', space=smem, size = 0x4, offset = 0x4, fixed_abs, tag = 'smem constant byte address 0x4 - core index']
  #allocation1 [shape = 'u32[144,128]{1,0:T(1,128)}', space=vmem, size = 0x12000, scoped, tag = 'internal scratch']
  %s0 = inlined_call_operand.vmem [shape: f32[6], index: 0, kind: input, shape index: {}]
  %s1 = inlined_call_operand.vmem [shape: f32[1,256], index: 1, kind: input, shape index: {}]
  %s2 = inlined_call_operand.vmem [shape: f32[1,256], index: 2, kind: input, shape index: {}]
  %s3 = inlined_call_operand.vmem [shape: bf16[128,16], index: 3, kind: input, shape index: {}]
  %s4 = inlined_call_operand.hbm [shape: f32[8,256], index: 4, kind: output, shape index: {}]
  %s5 = sld [smem:[#allocation0]]
  $region53: #{tpu_custom_call.1} parent=0
    _
  %s7 = ssub.s32 1, %s5
  %s8 = scalar_select 0, %s7, %s5
  $region1: #{tpu_custom_call.1} parent=0
    #allocation2 [shape = 'u8[512]{0}', space=smem, size = 0x200, scoped, tag = 'input window, operand 0, single buffered']
    #allocation3 [shape = 's32[2]{0}', space=sflag, size = 0x8, scoped, tag = 'scoped memory for tpu_custom_call.1']
    #allocation4 [shape = 's32[2]{0}', space=sflag, size = 0x8, scoped, tag = 'scoped memory for tpu_custom_call.1']
    #allocation5 [shape = 'u8[8192]{0}', space=vmem, size = 0x2000, scoped, tag = 'output window, operand 0']
    %9 = vsyncpa [#allocation4], 0
    %10 = vsyncpa [#allocation3], 0
    %s11 = scalar_lea.sflag [#allocation3], 1
    %12 = vsyncpa %s11, 0
    loop: start=0, step=1, limit=4
    $region2: #{tpu_custom_call.1} parent=1 // loop_pre_header
      _
    $region3: #{tpu_custom_call.1} parent=1 // loop_header
      %s14 = sphi 0, %s18
      %p15 = scmp.ge.s32.totalorder %s14, 4
      %s22 = sphi 0, %s22
      %s24 = sphi 0, %s22
      %s25 = sphi 0, %s24
      %s39 = sphi 0, %s25
      %s45 = sphi 0, %s47
      %s48 = sphi 0, %s45
      %s49 = sphi 0, %s48
      %s65 = sphi 0, %s49
      %s71 = sphi 0, %s73
      %s74 = sphi 0, %s71
      %s75 = sphi 0, %s74
      %s91 = sphi 0, %s75
      %s95 = sphi 0, %s95
      %s97 = sphi 0, %s95
      %s98 = sphi 0, %s97
      %s112 = sphi 0, %s98
      %s118 = sphi 0, %s120
      %s121 = sphi 0, %s118
      %s122 = sphi 0, %s121
      %s138 = sphi 0, %s122
    $region4: #{tpu_custom_call.1} parent=1 // loop_header_branch
      %17 = sbr.rel (%p15) target = $region8
    $region5: #{tpu_custom_call.1} parent=1 // loop_body
      %s19 = ssub.s32 %s14, 1
      %s20 = ssub.s32 %s14, 2
      %s21 = sadd.s32 %s14, 1
      %s23 = sadd.s32 %s22, 1
      %p26 = scmp.eq.s32.totalorder %s14, 1
      %p27 = scmp.ne.s32.totalorder %s22, %s24
      %p28 = scmp.eq.s32.totalorder %s14, 0
      %p29 = por %p27, %p28
      %p30 = scmp.ne.s32.totalorder %s22, %s24
      %p31 = scmp.eq.s32.totalorder %s19, 1
      %p32 = por %p30, %p31
      %p33 = scmp.ne.s32.totalorder %s24, %s25
      %p34 = scmp.eq.s32.totalorder %s19, 0
      %p35 = por %p33, %p34
      %p36 = scmp.ne.s32.totalorder %s24, %s25
      %p37 = scmp.eq.s32.totalorder %s20, 1
      %p38 = por %p36, %p37
      %p40 = scmp.ne.s32.totalorder %s25, %s39
      %p41 = scmp.eq.s32.totalorder %s20, 0
      %p42 = por %p40, %p41
      %s43 = ssub.s32 %s14, %s21
      %p44 = scmp.eq.s32.totalorder %s43, 0
      %s46 = sadd.s32 %s45, 1
      %s47 = scalar_select %p44, %s45, %s46
      %p50 = pneg %p44
      %p51 = scmp.eq.s32.totalorder %s14, 1
      %p52 = por %p50, %p51
      %p53 = scmp.ne.s32.totalorder %s45, %s48
      %p54 = scmp.eq.s32.totalorder %s14, 0
      %p55 = por %p53, %p54
      %p56 = scmp.ne.s32.totalorder %s45, %s48
      %p57 = scmp.eq.s32.totalorder %s19, 1
      %p58 = por %p56, %p57
      %p59 = scmp.ne.s32.totalorder %s48, %s49
      %p60 = scmp.eq.s32.totalorder %s19, 0
      %p61 = por %p59, %p60
      %p62 = scmp.ne.s32.totalorder %s48, %s49
      %p63 = scmp.eq.s32.totalorder %s20, 1
      %p64 = por %p62, %p63
      %p66 = scmp.ne.s32.totalorder %s49, %s65
      %p67 = scmp.eq.s32.totalorder %s20, 0
      %p68 = por %p66, %p67
      %s69 = ssub.s32 %s14, %s21
      %p70 = scmp.eq.s32.totalorder %s69, 0
      %s72 = sadd.s32 %s71, 1
      %s73 = scalar_select %p70, %s71, %s72
      %p76 = pneg %p70
      %p77 = scmp.eq.s32.totalorder %s14, 1
      %p78 = por %p76, %p77
      %p79 = scmp.ne.s32.totalorder %s71, %s74
      %p80 = scmp.eq.s32.totalorder %s14, 0
      %p81 = por %p79, %p80
      %p82 = scmp.ne.s32.totalorder %s71, %s74
      %p83 = scmp.eq.s32.totalorder %s19, 1
      %p84 = por %p82, %p83
      %p85 = scmp.ne.s32.totalorder %s74, %s75
      %p86 = scmp.eq.s32.totalorder %s19, 0
      %p87 = por %p85, %p86
      %p88 = scmp.ne.s32.totalorder %s74, %s75
      %p89 = scmp.eq.s32.totalorder %s20, 1
      %p90 = por %p88, %p89
      %p92 = scmp.ne.s32.totalorder %s75, %s91
      %p93 = scmp.eq.s32.totalorder %s20, 0
      %p94 = por %p92, %p93
      %s96 = sadd.s32 %s95, 1
      %p99 = scmp.eq.s32.totalorder %s14, 1
      %p100 = scmp.ne.s32.totalorder %s95, %s97
      %p101 = scmp.eq.s32.totalorder %s14, 0
      %p102 = por %p100, %p101
      %p103 = scmp.ne.s32.totalorder %s95, %s97
      %p104 = scmp.eq.s32.totalorder %s19, 1
      %p105 = por %p103, %p104
      %p106 = scmp.ne.s32.totalorder %s97, %s98
      %p107 = scmp.eq.s32.totalorder %s19, 0
      %p108 = por %p106, %p107
      %p109 = scmp.ne.s32.totalorder %s97, %s98
      %p110 = scmp.eq.s32.totalorder %s20, 1
      %p111 = por %p109, %p110
      %p113 = scmp.ne.s32.totalorder %s98, %s112
      %p114 = scmp.eq.s32.totalorder %s20, 0
      %p115 = por %p113, %p114
      %s116 = ssub.s32 %s14, %s21
      %p117 = scmp.eq.s32.totalorder %s116, 0
      %s119 = sadd.s32 %s118, 1
      %s120 = scalar_select %p117, %s118, %s119
      %p123 = pneg %p117
      %p124 = scmp.eq.s32.totalorder %s14, 1
      %p125 = por %p123, %p124
      %p126 = scmp.ne.s32.totalorder %s118, %s121
      %p127 = scmp.eq.s32.totalorder %s14, 0
      %p128 = por %p126, %p127
      %p129 = scmp.ne.s32.totalorder %s118, %s121
      %p130 = scmp.eq.s32.totalorder %s19, 1
      %p131 = por %p129, %p130
      %p132 = scmp.ne.s32.totalorder %s121, %s122
      %p133 = scmp.eq.s32.totalorder %s19, 0
      %p134 = por %p132, %p133
      %p135 = scmp.ne.s32.totalorder %s121, %s122
      %p136 = scmp.eq.s32.totalorder %s20, 1
      %p137 = por %p135, %p136
      %p139 = scmp.ne.s32.totalorder %s122, %s138
      %p140 = scmp.eq.s32.totalorder %s20, 0
      %p141 = por %p139, %p140
      %p142 = scmp.le.s32.totalorder 1, %s14
      %p143 = scmp.lt.s32.totalorder %s14, 3
      %p144 = pnand %p142, %p143
      %p145 = pneg %p144
      // Predicated region
      $region9: #{tpu_custom_call.1} parent=5 // pred_check
        _
      $region10: #{tpu_custom_call.1} parent=5 // pred_check_branch
        %147 = sbr.rel (%p144) target = $region12
      $region11: #{tpu_custom_call.1} parent=5 // pred_region
        %s148 = ssub.s32 %s14, 1
        // Predicated region
        $region13: #{tpu_custom_call.1} parent=11 // pred_check
          %p149 = pneg %p35
        $region14: #{tpu_custom_call.1} parent=11 // pred_check_branch
          %151 = sbr.rel (%p149) target = $region16
        $region15: #{tpu_custom_call.1} parent=11 // pred_region
          %s153 = ssub.s32 16, 16
          %154 = vsyncadd [#allocation4], %s153
          %s156 = sshll.u32 %s0, 4
          %s157 = int_to_ptr.vmem [resolvable:$true] %s156
          %159 = dma.vmem_to_smem %s157, 16, [#allocation2], [#allocation4]
        $region16: #{tpu_custom_call.1} parent=11 // pred_fallthru
          _
        // Predicated region
        $region17: #{tpu_custom_call.1} parent=11 // pred_check
          %p160 = pneg %p108
        $region18: #{tpu_custom_call.1} parent=11 // pred_check_branch
          %162 = sbr.rel (%p160) target = $region20
        $region19: #{tpu_custom_call.1} parent=11 // pred_region
          _
        $region20: #{tpu_custom_call.1} parent=11 // pred_fallthru
          _
      $region12: #{tpu_custom_call.1} parent=5 // pred_fallthru
        _
      %p163 = scmp.lt.s32.totalorder %s14, 2
      // Predicated region
      $region21: #{tpu_custom_call.1} parent=5 // pred_check
        %p164 = pneg %p163
      $region22: #{tpu_custom_call.1} parent=5 // pred_check_branch
        %166 = sbr.rel (%p164) target = $region24
      $region23: #{tpu_custom_call.1} parent=5 // pred_region
        // Predicated region
        $region25: #{tpu_custom_call.1} parent=23 // pred_check
          %p167 = pneg %p55
        $region26: #{tpu_custom_call.1} parent=23 // pred_check_branch
          %169 = sbr.rel (%p167) target = $region28
        $region27: #{tpu_custom_call.1} parent=23 // pred_region
          %p170 = scmp.lt.s32.totalorder %s14, 1
          %s171 = scalar_select %p170, %s14, 1
          %s172 = scalar_lea.vmem %s1, %s171
        $region28: #{tpu_custom_call.1} parent=23 // pred_fallthru
          _
        // Predicated region
        $region29: #{tpu_custom_call.1} parent=23 // pred_check
          %p173 = pneg %p81
        $region30: #{tpu_custom_call.1} parent=23 // pred_check_branch
          %175 = sbr.rel (%p173) target = $region32
        $region31: #{tpu_custom_call.1} parent=23 // pred_region
          %p176 = scmp.lt.s32.totalorder %s14, 1
          %s177 = scalar_select %p176, %s14, 1
          %s178 = scalar_lea.vmem %s2, %s177
        $region32: #{tpu_custom_call.1} parent=23 // pred_fallthru
          _
      $region24: #{tpu_custom_call.1} parent=5 // pred_fallthru
        _
      %p179 = scmp.le.s32.totalorder 1, %s14
      %p180 = scmp.lt.s32.totalorder %s14, 3
      %p181 = pnand %p179, %p180
      %p182 = pneg %p181
      // Predicated region
      $region33: #{tpu_custom_call.1} parent=5 // pred_check
        _
      $region34: #{tpu_custom_call.1} parent=5 // pred_check_branch
        %184 = sbr.rel (%p181) target = $region36
      $region35: #{tpu_custom_call.1} parent=5 // pred_region
        %s185 = ssub.s32 %s14, 1
        // Predicated region
        $region37: #{tpu_custom_call.1} parent=35 // pred_check
          %p186 = pneg %p35
        $region38: #{tpu_custom_call.1} parent=35 // pred_check_branch
          %188 = sbr.rel (%p186) target = $region40
        $region39: #{tpu_custom_call.1} parent=35 // pred_region
          %189 = dma.done [#allocation4], 16
        $region40: #{tpu_custom_call.1} parent=35 // pred_fallthru
          _
        %190 = sfence
        %p191 = pneg %p35
        %p192 = pneg %p32
        %p193 = scmp.lt.s32.totalorder %s19, 1
        %s194 = scalar_select %p193, %s19, 1
        %s195 = scalar_lea.vmem %s1, %s194
        %p196 = pneg %p61
        %p197 = pneg %p58
        %p198 = scmp.lt.s32.totalorder %s19, 1
        %s199 = scalar_select %p198, %s19, 1
        %s200 = scalar_lea.vmem %s2, %s199
        %p201 = pneg %p87
        %p202 = pneg %p84
        %p203 = pneg %p108
        %p204 = pneg %p105
        %p205 = pneg %p134
        %p206 = pneg %p131
        %s207 = sand.u32 %s121, 1
        %s208 = scalar_lea.sflag [#allocation3], %s207
        %s209 = sand.u32 %s121, 1
        %s210 = smul.addr %s209, 8
        %s211 = scalar_lea.vmem [#allocation5], %s210
        %p212 = scmp.lt.s32.totalorder %s19, 1
        %s213 = scalar_select %p212, %s19, 1
        %s214 = scalar_lea.vmem %s1, %s213
        %p215 = scmp.lt.s32.totalorder %s19, 1
        %s216 = scalar_select %p215, %s19, 1
        %s217 = scalar_lea.vmem %s2, %s216
        %v219 = vld [vmem:[%s214] sm:$0x1]
        %v220 = vld [vmem:[%s217] sm:$0x1]
        %s221 = sld [smem:[#allocation2]]
        %s222 = sld [smem:[#allocation2 + $0x1]]
        %s223 = sld [smem:[#allocation2 + $0x2]]
        %s224 = sld [smem:[#allocation2 + $0x3]]
        %s225 = sld [smem:[#allocation2 + $0x4]]
        %s226 = sld [smem:[#allocation2 + $0x5]]
        %v227 = vstv %s221
        %v228 = vmul.f32 %v227, %v219
        %v229 = vstv %s222
        %v230 = vmul.f32 %v229, %v220
        %v231 = vadd.f32 %v228, %v230
        %v232 = vstv %s223
        %v233 = vadd.f32 %v231, %v232
        %v234 = vstv %s224
        %v235 = vmul.f32 %v234, %v219
        %v236 = vstv %s225
        %v237 = vmul.f32 %v236, %v220
        %v238 = vadd.f32 %v235, %v237
        %v239 = vstv %s226
        %v240 = vadd.f32 %v238, %v239
        %v241 = vadd.f32 %v233, 1.0
        %v242 = vmul.f32 %v241, 8.0
        %v243 = vsub.f32 %v242, 0.5
        %v244 = vadd.f32 %v240, 1.0
        %v245 = vmul.f32 %v244, 8.0
        %v246 = vsub.f32 %v245, 0.5
        %v247 = vlaneseq
        %v248 = vshrl.u32 %v247, 7
        %v249 = vadd.s32 %v248, 8
        %v250 = vcvt.s32.f32 %v248
        %v251 = vcvt.s32.f32 %v249
        %v253 = vlaneseq
        %v254 = vshrl.u32 %v253, 7
        %v255 = vsub.s32 0, %v254
        %v256 = vrot.slane %v243, %v255
        %v258 = vsub.f32 %v250, %v256
        %v259 = vsub.f32 %v251, %v256
        %v260 = vand.u32 2147483647, %v258
        %v261 = vand.u32 2147483647, %v259
        %v262 = vsub.f32 1.0, %v260
        %v263 = vsub.f32 1.0, %v261
        %v264 = vmax.f32 %v262, 0.0
        %v265 = vmax.f32 %v263, 0.0
        %v267 = vlaneseq
        %v268 = vshrl.u32 %v267, 7
        %v269 = vsub.s32 0, %v268
        %v270 = vrot.slane %v246, %v269
        %v272 = vsub.f32 %v250, %v270
        %v273 = vsub.f32 %v251, %v270
        %v274 = vand.u32 2147483647, %v272
        %v275 = vand.u32 2147483647, %v273
        %v276 = vsub.f32 1.0, %v274
        %v277 = vsub.f32 1.0, %v275
        %v278 = vmax.f32 %v276, 0.0
        %v279 = vmax.f32 %v277, 0.0
        %v280 = vld [vmem:[%s3] sm:$0xf]
        %v281 = vld [vmem:[%s3 + $0x4] sm:$0xf]
        %v282 = vld [vmem:[%s3 + $0x8] sm:$0xf]
        %v283 = vld [vmem:[%s3 + $0xc] sm:$0xf]
        %v284 = vld [vmem:[%s3 + $0x10] sm:$0xf]
        %v285 = vld [vmem:[%s3 + $0x14] sm:$0xf]
        %v286 = vld [vmem:[%s3 + $0x18] sm:$0xf]
        %v287 = vld [vmem:[%s3 + $0x1c] sm:$0xf]
        %v288 = vld [vmem:[%s3 + $0x20] sm:$0xf]
        %v289 = vld [vmem:[%s3 + $0x24] sm:$0xf]
        %v290 = vld [vmem:[%s3 + $0x28] sm:$0xf]
        %v291 = vld [vmem:[%s3 + $0x2c] sm:$0xf]
        %v292 = vld [vmem:[%s3 + $0x30] sm:$0xf]
        %v293 = vld [vmem:[%s3 + $0x34] sm:$0xf]
        %v294 = vld [vmem:[%s3 + $0x38] sm:$0xf]
        %v295 = vld [vmem:[%s3 + $0x3c] sm:$0xf]
        %v296 = vpack.c.bf16 %v265, %v264
        %v313 = vunpack.c.l.b16 %v280
        %v314 = vunpack.c.l.b16 %v281
        %v315 = vunpack.c.l.b16 %v282
        %v316 = vunpack.c.l.b16 %v283
        %v317 = vunpack.c.l.b16 %v284
        %v318 = vunpack.c.l.b16 %v285
        %v319 = vunpack.c.l.b16 %v286
        %v320 = vunpack.c.l.b16 %v287
        %v321 = vunpack.c.l.b16 %v288
        %v322 = vunpack.c.l.b16 %v289
        %v323 = vunpack.c.l.b16 %v290
        %v324 = vunpack.c.l.b16 %v291
        %v325 = vunpack.c.l.b16 %v292
        %v326 = vunpack.c.l.b16 %v293
        %v327 = vunpack.c.l.b16 %v294
        %v328 = vunpack.c.l.b16 %v295
        %v329 = vpack.c.b16 %v314, %v313
        %v330 = vpack.c.b16 %v316, %v315
        %v331 = vpack.c.b16 %v318, %v317
        %v332 = vpack.c.b16 %v320, %v319
        %v333 = vpack.c.b16 %v322, %v321
        %v334 = vpack.c.b16 %v324, %v323
        %v335 = vpack.c.b16 %v326, %v325
        %v336 = vpack.c.b16 %v328, %v327
        %vm337 = vcmask 130048
        %v339 = vsel %vm337, %v329, 0
        %v342 = vsel %vm337, %v330, 0
        %v345 = vsel %vm337, %v331, 0
        %v348 = vsel %vm337, %v332, 0
        %v351 = vsel %vm337, %v333, 0
        %v354 = vsel %vm337, %v334, 0
        %v357 = vsel %vm337, %v335, 0
        %v360 = vsel %vm337, %v336, 0
        %362 = vmatprep.subr.bf16.mxu0 0
        %363 = vmatpush1.bf16.msra.mxu0 0
        %364 = vmatprep.subr.bf16.mxu0 0
        %365 = vmatpush1.bf16.msra.mxu0 0
        %366 = vmatprep.subr.bf16.mxu0 0
        %367 = vmatpush1.bf16.msra.mxu0 0
        %368 = vmatprep.subr.bf16.mxu0 0
        %369 = vmatpush1.bf16.msra.mxu0 0
        %370 = vmatprep.subr.bf16.mxu0 0
        %371 = vmatpush1.bf16.msra.mxu0 0
        %372 = vmatprep.subr.bf16.mxu0 0
        %373 = vmatpush1.bf16.msra.mxu0 0
        %374 = vmatprep.subr.bf16.mxu0 0
        %375 = vmatpush1.bf16.msra.mxu0 0
        %376 = vmatprep.subr.bf16.mxu0 0
        %377 = vmatpush1.bf16.msra.mxu0 %v296
        %378 = vmatprep.subr.bf16.mxu0 0
        %379 = vmatpush2.bf16.msra.mxu0 0
        %380 = vmatprep.subr.bf16.mxu0 0
        %381 = vmatpush2.bf16.msra.mxu0 0
        %382 = vmatprep.subr.bf16.mxu0 0
        %383 = vmatpush2.bf16.msra.mxu0 0
        %384 = vmatprep.subr.bf16.mxu0 0
        %385 = vmatpush2.bf16.msra.mxu0 0
        %386 = vmatprep.subr.bf16.mxu0 0
        %387 = vmatpush2.bf16.msra.mxu0 0
        %388 = vmatprep.subr.bf16.mxu0 0
        %389 = vmatpush2.bf16.msra.mxu0 0
        %390 = vmatprep.subr.bf16.mxu0 0
        %391 = vmatpush2.bf16.msra.mxu0 0
        %392 = vmatprep.subr.bf16.mxu0 0
        %393 = vmatpush2.bf16.msra.mxu0 0
        %394 = vmatprep.mubr.bf16.mxu0 0
        %395 = vmatmul.mubr.bf16.gmra.mxu0 %v339
        %v396 = vpop.f32.mrf.mxu0
        %v397 = vadd.f32 0.0, %v396
        %v398 = vpop.f32.mrf.mxu0
        %v399 = vpop.f32.mrf.mxu0
        %v400 = vadd.f32 0.0, %v399
        %v401 = vpop.f32.mrf.mxu0
        %402 = vmatprep.mubr.bf16.mxu0 0
        %403 = vmatmul.mubr.bf16.gmra.mxu0 %v342
        %v404 = vpop.f32.mrf.mxu0
        %v405 = vadd.f32 0.0, %v404
        %v406 = vpop.f32.mrf.mxu0
        %v407 = vpop.f32.mrf.mxu0
        %v408 = vadd.f32 0.0, %v407
        %v409 = vpop.f32.mrf.mxu0
        %410 = vmatprep.mubr.bf16.mxu0 0
        %411 = vmatmul.mubr.bf16.gmra.mxu0 %v345
        %v412 = vpop.f32.mrf.mxu0
        %v413 = vadd.f32 0.0, %v412
        %v414 = vpop.f32.mrf.mxu0
        %v415 = vpop.f32.mrf.mxu0
        %v416 = vadd.f32 0.0, %v415
        %v417 = vpop.f32.mrf.mxu0
        %418 = vmatprep.mubr.bf16.mxu0 0
        %419 = vmatmul.mubr.bf16.gmra.mxu0 %v348
        %v420 = vpop.f32.mrf.mxu0
        %v421 = vadd.f32 0.0, %v420
        %v422 = vpop.f32.mrf.mxu0
        %v423 = vpop.f32.mrf.mxu0
        %v424 = vadd.f32 0.0, %v423
        %v425 = vpop.f32.mrf.mxu0
        %426 = vmatprep.mubr.bf16.mxu0 0
        %427 = vmatmul.mubr.bf16.gmra.mxu0 %v351
        %v428 = vpop.f32.mrf.mxu0
        %v429 = vadd.f32 0.0, %v428
        %v430 = vpop.f32.mrf.mxu0
        %v431 = vpop.f32.mrf.mxu0
        %v432 = vadd.f32 0.0, %v431
        %v433 = vpop.f32.mrf.mxu0
        %434 = vmatprep.mubr.bf16.mxu0 0
        %435 = vmatmul.mubr.bf16.gmra.mxu0 %v354
        %v436 = vpop.f32.mrf.mxu0
        %v437 = vadd.f32 0.0, %v436
        %v438 = vpop.f32.mrf.mxu0
        %v439 = vpop.f32.mrf.mxu0
        %v440 = vadd.f32 0.0, %v439
        %v441 = vpop.f32.mrf.mxu0
        %442 = vmatprep.mubr.bf16.mxu0 0
        %443 = vmatmul.mubr.bf16.gmra.mxu0 %v357
        %v444 = vpop.f32.mrf.mxu0
        %v445 = vadd.f32 0.0, %v444
        %v446 = vpop.f32.mrf.mxu0
        %v447 = vpop.f32.mrf.mxu0
        %v448 = vadd.f32 0.0, %v447
        %v449 = vpop.f32.mrf.mxu0
        %450 = vmatprep.mubr.bf16.mxu0 0
        %451 = vmatmul.mubr.bf16.gmra.mxu0 %v360
        %v452 = vpop.f32.mrf.mxu0
        %v453 = vadd.f32 0.0, %v452
        %v454 = vpop.f32.mrf.mxu0
        %v455 = vpop.f32.mrf.mxu0
        %v456 = vadd.f32 0.0, %v455
        %v457 = vpop.f32.mrf.mxu0
        %458 = vdwg.mxu0
        %v459 = vmul.f32 %v397, %v278
        %v460 = vmul.f32 %v400, %v279
        %v461 = vmul.f32 %v405, %v278
        %v462 = vmul.f32 %v408, %v279
        %v463 = vmul.f32 %v413, %v278
        %v464 = vmul.f32 %v416, %v279
        %v465 = vmul.f32 %v421, %v278
        %v466 = vmul.f32 %v424, %v279
        %v467 = vmul.f32 %v429, %v278
        %v468 = vmul.f32 %v432, %v279
        %v469 = vmul.f32 %v437, %v278
        %v470 = vmul.f32 %v440, %v279
        %v471 = vmul.f32 %v445, %v278
        %v472 = vmul.f32 %v448, %v279
        %v473 = vmul.f32 %v453, %v278
        %v474 = vmul.f32 %v456, %v279
        %v475 = vadd.f32 %v459, %v460
        %v476 = vrot.slane %v475, 4
        %v477 = vadd.f32 %v475, %v476
        %v478 = vrot.slane %v477, 2
        %v479 = vadd.f32 %v477, %v478
        %v480 = vrot.slane %v479, 1
        %v481 = vadd.f32 %v479, %v480
        %v482 = vadd.f32 %v461, %v462
        %v483 = vrot.slane %v482, 4
        %v484 = vadd.f32 %v482, %v483
        %v485 = vrot.slane %v484, 2
        %v486 = vadd.f32 %v484, %v485
        %v487 = vrot.slane %v486, 1
        %v488 = vadd.f32 %v486, %v487
        %v489 = vadd.f32 %v463, %v464
        %v490 = vrot.slane %v489, 4
        %v491 = vadd.f32 %v489, %v490
        %v492 = vrot.slane %v491, 2
        %v493 = vadd.f32 %v491, %v492
        %v494 = vrot.slane %v493, 1
        %v495 = vadd.f32 %v493, %v494
        %v496 = vadd.f32 %v465, %v466
        %v497 = vrot.slane %v496, 4
        %v498 = vadd.f32 %v496, %v497
        %v499 = vrot.slane %v498, 2
        %v500 = vadd.f32 %v498, %v499
        %v501 = vrot.slane %v500, 1
        %v502 = vadd.f32 %v500, %v501
        %v503 = vadd.f32 %v467, %v468
        %v504 = vrot.slane %v503, 4
        %v505 = vadd.f32 %v503, %v504
        %v506 = vrot.slane %v505, 2
        %v507 = vadd.f32 %v505, %v506
        %v508 = vrot.slane %v507, 1
        %v509 = vadd.f32 %v507, %v508
        %v510 = vadd.f32 %v469, %v470
        %v511 = vrot.slane %v510, 4
        %v512 = vadd.f32 %v510, %v511
        %v513 = vrot.slane %v512, 2
        %v514 = vadd.f32 %v512, %v513
        %v515 = vrot.slane %v514, 1
        %v516 = vadd.f32 %v514, %v515
        %v517 = vadd.f32 %v471, %v472
        %v518 = vrot.slane %v517, 4
        %v519 = vadd.f32 %v517, %v518
        %v520 = vrot.slane %v519, 2
        %v521 = vadd.f32 %v519, %v520
        %v522 = vrot.slane %v521, 1
        %v523 = vadd.f32 %v521, %v522
        %v524 = vadd.f32 %v473, %v474
        %v525 = vrot.slane %v524, 4
        %v526 = vadd.f32 %v524, %v525
        %v527 = vrot.slane %v526, 2
        %v528 = vadd.f32 %v526, %v527
        %v529 = vrot.slane %v528, 1
        %v530 = vadd.f32 %v528, %v529
        %vm539 = vcmask 1041409
        %v540 = vsel %vm539, %v488, %v481
        %vm541 = vcmask 1042434
        %v542 = vsel %vm541, %v495, %v540
        %vm543 = vcmask 1043459
        %v544 = vsel %vm543, %v502, %v542
        %vm545 = vcmask 1044484
        %v546 = vsel %vm545, %v509, %v544
        %vm547 = vcmask 1045509
        %v548 = vsel %vm547, %v516, %v546
        %vm549 = vcmask 1046534
        %v550 = vsel %vm549, %v523, %v548
        %vm551 = vcmask 1047559
        %v552 = vsel %vm551, %v530, %v550
        %554 = vst [vmem:[%s211] sm:$0xff] %v552
        %s555 = sand.u32 %s121, 1
        %s556 = scalar_lea.sflag [#allocation3], %s555
        %s557 = sand.u32 %s121, 1
        %s558 = smul.addr %s557, 8
        %s559 = scalar_lea.vmem [#allocation5], %s558
        // Predicated region
        $region41: #{tpu_custom_call.1} parent=35 // pred_check
          %p560 = pneg %p131
        $region42: #{tpu_custom_call.1} parent=35 // pred_check_branch
          %562 = sbr.rel (%p560) target = $region44
        $region43: #{tpu_custom_call.1} parent=35 // pred_region
          %s564 = ssub.s32 128, 128
          %565 = vsyncadd %s556, %s564
          %s566 = smul.addr %s19, 128
          %s567 = scalar_lea.hbm %s4, %s566
          %s569 = sshll.u32 %s559, 4
          %s570 = int_to_ptr.vmem [resolvable:$true] %s569
          %572 = dma.vmem_to_hbm [thread:$0]  %s570, 128, %s567, %s556
        $region44: #{tpu_custom_call.1} parent=35 // pred_fallthru
          _
      $region36: #{tpu_custom_call.1} parent=5 // pred_fallthru
        _
      %p573 = scmp.le.s32.totalorder 2, %s14
      // Predicated region
      $region45: #{tpu_custom_call.1} parent=5 // pred_check
        %p574 = pneg %p573
      $region46: #{tpu_custom_call.1} parent=5 // pred_check_branch
        %576 = sbr.rel (%p574) target = $region48
      $region47: #{tpu_custom_call.1} parent=5 // pred_region
        %s577 = ssub.s32 %s14, 2
        // Predicated region
        $region49: #{tpu_custom_call.1} parent=47 // pred_check
          %p578 = pneg %p137
        $region50: #{tpu_custom_call.1} parent=47 // pred_check_branch
          %580 = sbr.rel (%p578) target = $region52
        $region51: #{tpu_custom_call.1} parent=47 // pred_region
          %s581 = sand.u32 %s122, 1
          %s582 = scalar_lea.sflag [#allocation3], %s581
          %s583 = sand.u32 %s122, 1
          %s584 = smul.addr %s583, 8
          %s585 = scalar_lea.vmem [#allocation5], %s584
          %586 = dma.done %s582, 128
        $region52: #{tpu_custom_call.1} parent=47 // pred_fallthru
          _
      $region48: #{tpu_custom_call.1} parent=5 // pred_fallthru
        _
    $region6: #{tpu_custom_call.1} parent=1 // loop_footer
      %s18 = sadd.s32 1, %s14
    $region7: #{tpu_custom_call.1} parent=1 // loop_footer_branch
      %13 = sbr.rel target = $region3
    $region8: #{tpu_custom_call.1} parent=1 // loop_exit
      _
    %587 = vsyncpa [#allocation3], 1
    %s588 = scalar_lea.sflag [#allocation3], 1
    %589 = vsyncpa %s588, 1
    %590 = vsyncpa [#allocation4], 1
    %s591 = scalar_lea.sflag [#allocation4], 1
    %592 = vsyncpa %s591, 1

</llo_original>
